<compile_context>
chip_gen: v5e
topology: v5e:2x2
jax: 0.10.0
libtpu: 0.0.40
codegen_flags: <defaults>
</compile_context>

<pallas_src>
import functools

import jax
import jax.numpy as jnp
from jax.experimental import pallas as pl
from jax.experimental.pallas import tpu as pltpu


def _pooler_matmul_kernel(x_ref, w_ref, b_ref, o_ref, acc_ref):
    """One (tm, tn) output tile of  Y = X @ W_t + b  with contraction over the H grid axis.

    x_ref  : (tm, tk) CLS-row tile
    w_ref  : (tk, tn) pre-transposed pooler weight tile
    b_ref  : (1,  tn) bias tile
    o_ref  : (tm, tn) output tile
    acc_ref: (tm, tn) f32 VMEM accumulator scratch (resident across the k axis)
    """
    k = pl.program_id(2)

    @pl.when(k == 0)
    def _init():
        acc_ref[...] = jnp.zeros_like(acc_ref)

    acc_ref[...] += jnp.dot(x_ref[...], w_ref[...], preferred_element_type=jnp.float32)

    @pl.when(k == pl.num_programs(2) - 1)
    def _finalize():
        o_ref[...] = (acc_ref[...] + b_ref[...].astype(jnp.float32)).astype(o_ref.dtype)


def _round_up(v, m):
    return ((v + m - 1) // m) * m


def _pick_tile(d, unit, cap):
    """Largest tile (multiple of `unit`, <= cap) that divides round_up(d, unit) if possible."""
    dp = _round_up(d, unit)
    if dp <= cap:
        return dp
    t = cap
    while t >= unit:
        if dp % t == 0:
            return t
        t -= unit
    return cap


def _fused_cls_linear(x, w_t, b):
    """Y = x @ w_t + b via a tiled, pipelined Pallas matmul.

    x   : (M, H)  stacked CLS rows (M = 2B for fused q+p).
    w_t : (H, O)  pooler weight, already transposed (nn.Linear weight.T).
    b   : (O,)    pooler bias.
    Returns (M, O) in x.dtype.
    """
    M, H = x.shape
    Hw, O = w_t.shape
    assert H == Hw, "weight / hidden dim mismatch"

    # Sublane-aligned M tile, lane-aligned O / H tiles.  Small dims round up to the minimum
    # (8, 128) tile; large dims get divisor tiles so no padded-zero contraction work.
    tm = _pick_tile(M, 8, 128)
    tn = _pick_tile(O, 128, 256)
    tk = _pick_tile(H, 128, 512)

    Mp, Op, Hp = _round_up(M, tm), _round_up(O, tn), _round_up(H, tk)

    # Zero-pad to tile multiples: padded H contributes 0 to the accumulation, padded M/O rows and
    # columns are sliced off below.  Keeps every block (8, 128)-aligned => lane-dense stores.
    xp = x if (Mp == M and Hp == H) else jnp.pad(x, ((0, Mp - M), (0, Hp - H)))
    wp = w_t if (Hp == H and Op == O) else jnp.pad(w_t, ((0, Hp - H), (0, Op - O)))
    bp = (b if Op == O else jnp.pad(b, (0, Op - O))).reshape(1, Op)

    out_dtype = x.dtype
    grid = (Mp // tm, Op // tn, Hp // tk)

    cost = pl.CostEstimate(
        flops=2 * Mp * Hp * Op,
        transcendentals=0,
        bytes_accessed=(
            xp.size * xp.dtype.itemsize
            + wp.size * wp.dtype.itemsize
            + bp.size * bp.dtype.itemsize
            + Mp * Op * jnp.dtype(out_dtype).itemsize
        ),
    )

    yp = pl.pallas_call(
        _pooler_matmul_kernel,
        out_shape=jax.ShapeDtypeStruct((Mp, Op), out_dtype),
        grid_spec=pltpu.PrefetchScalarGridSpec(
            num_scalar_prefetch=0,
            grid=grid,
            in_specs=[
                pl.BlockSpec((tm, tk), lambda i, j, k: (i, k)),   # CLS rows
                pl.BlockSpec((tk, tn), lambda i, j, k: (k, j)),   # weight (shared by q & p)
                pl.BlockSpec((1, tn), lambda i, j, k: (0, j)),    # bias
            ],
            out_specs=pl.BlockSpec((tm, tn), lambda i, j, k: (i, j)),
            scratch_shapes=[pltpu.VMEM((tm, tn), jnp.float32)],
        ),
        compiler_params=pltpu.CompilerParams(
            dimension_semantics=("parallel", "parallel", "arbitrary"),
        ),
        cost_estimate=cost,
    )(xp, wp, bp)

    return yp[:M, :O]


@functools.partial(jax.jit, static_argnames=())
def dense_model_for_inference_forward(q_hidden, p_hidden, pooler_w_t, pooler_b):
    """DenseModelForInference.forward with a tied LinearPooler.

    q_hidden / p_hidden : (B, S, H) last hidden states of lm_q / lm_p (external encoders).
    pooler_w_t          : (H, O)  pooler weight, PRE-TRANSPOSED once at model-load time
                          (== torch nn.Linear weight.T).
    pooler_b            : (O,)    pooler bias.
    Returns (q_reps, p_reps), each (B, O).
    """
    B = q_hidden.shape[0]
    # CLS-token selection in the wrapper: only token-0 rows reach the kernel (no (B,S,H) DMA).
    q_cls = q_hidden[:, 0, :]                       # (B, H)
    p_cls = p_hidden[:, 0, :]                       # (B, H)
    # Fuse q and p into a single call: weight is loaded once, MXU M dimension is doubled.
    x = jnp.concatenate([q_cls, p_cls], axis=0)     # (2B, H)
    y = _fused_cls_linear(x, pooler_w_t, pooler_b)  # (2B, O)
    return y[:B], y[B:]


if __name__ == "__main__":
    # Small shapes consistent with the module: batch=2, seq=8, hidden=32, pooler out=32.
    B, S, H, O = 2, 8, 32, 32

    key = jax.random.PRNGKey(0)
    k_qh, k_ph, k_w, k_b = jax.random.split(key, 4)

    # Stand-in encoder outputs (lm_q / lm_p last hidden states).
    q_hidden = jax.random.normal(k_qh, (B, S, H), dtype=jnp.float32)
    p_hidden = jax.random.normal(k_ph, (B, S, H), dtype=jnp.float32)

    # Pooler parameters in PyTorch nn.Linear convention (O, H) / (O,).
    bound = 1.0 / (H ** 0.5)
    pooler_w = jax.random.uniform(k_w, (O, H), minval=-bound, maxval=bound, dtype=jnp.float32)
    pooler_b = jax.random.uniform(k_b, (O,), minval=-bound, maxval=bound, dtype=jnp.float32)

    # Transpose ONCE at "model load" time (static inference weight), not inside the forward.
    pooler_w_t = jnp.asarray(pooler_w.T)            # (H, O)

    q_reps, p_reps = dense_model_for_inference_forward(q_hidden, p_hidden, pooler_w_t, pooler_b)
    jax.block_until_ready((q_reps, p_reps))

    # Reference check in plain JAX (same semantics as LinearPooler, tied weights).
    q_ref = q_hidden[:, 0, :] @ pooler_w.T + pooler_b
    p_ref = p_hidden[:, 0, :] @ pooler_w.T + pooler_b
    assert q_reps.shape == (B, O) and p_reps.shape == (B, O)
    assert jnp.allclose(q_reps, q_ref, atol=1e-5), "q_reps mismatch"
    assert jnp.allclose(p_reps, p_ref, atol=1e-5), "p_reps mismatch"

    print("KERNEL_OK")
</pallas_src>

<mosaic_0001>
module attributes {stable_mosaic.version = 11 : i64} {
  func.func @_pooler_matmul_kernel(%arg0: i32, %arg1: i32, %arg2: i32, %arg3: memref<8x128xf32, #tpu.memory_space<vmem>>, %arg4: memref<128x128xf32, #tpu.memory_space<vmem>>, %arg5: memref<1x128xf32, #tpu.memory_space<vmem>>, %arg6: memref<8x128xf32, #tpu.memory_space<vmem>>, %arg7: memref<8x128xf32, #tpu.memory_space<vmem>>) attributes {dimension_semantics = [#tpu.dimension_semantics<parallel>, #tpu.dimension_semantics<parallel>, #tpu.dimension_semantics<arbitrary>], iteration_bounds = array<i64: 1, 1, 1>, scalar_prefetch = 0 : i64, scratch_operands = 1 : i64, tpu.core_type = #tpu.core_type<tc>, window_params = [{transform_indices = @transform_0, window_bounds = array<i64: 8, 128>}, {transform_indices = @transform_1, window_bounds = array<i64: 128, 128>}, {transform_indices = @transform_2, window_bounds = array<i64: 1, 128>}, {transform_indices = @transform_3, window_bounds = array<i64: 8, 128>}]} {
    %c0_i32 = arith.constant 0 : i32
    %0 = arith.cmpi eq, %arg2, %c0_i32 : i32
    %1 = arith.extui %0 : i1 to i32
    %c0_i32_0 = arith.constant 0 : i32
    %2 = arith.cmpi ne, %1, %c0_i32_0 : i32
    scf.if %2 {
      %cst_10 = arith.constant 0.000000e+00 : f32
      %12 = vector.broadcast %cst_10 : f32 to vector<8x128xf32>
      %c0_11 = arith.constant 0 : index
      %c0_12 = arith.constant 0 : index
      %13 = vector.load %arg7[%c0_11, %c0_12] : memref<8x128xf32, #tpu.memory_space<vmem>>, vector<8x128xf32>
      tpu.vector_store %arg7[%c0_11, %c0_12], %12 {strides = array<i32>} : memref<8x128xf32, #tpu.memory_space<vmem>>, vector<8x128xf32>,
    } else {
    }
    %c0 = arith.constant 0 : index
    %c0_1 = arith.constant 0 : index
    %3 = vector.load %arg7[%c0, %c0_1] : memref<8x128xf32, #tpu.memory_space<vmem>>, vector<8x128xf32>
    %c0_2 = arith.constant 0 : index
    %c0_3 = arith.constant 0 : index
    %4 = vector.load %arg3[%c0_2, %c0_3] : memref<8x128xf32, #tpu.memory_space<vmem>>, vector<8x128xf32>
    %c0_4 = arith.constant 0 : index
    %c0_5 = arith.constant 0 : index
    %5 = vector.load %arg4[%c0_4, %c0_5] : memref<128x128xf32, #tpu.memory_space<vmem>>, vector<128x128xf32>
    %cst = arith.constant dense<0.000000e+00> : vector<8x128xf32>
    %6 = tpu.matmul %4, %5, %cst {dimension_numbers = #tpu.dot_dimension_numbers<[1], [0], [0], [1], [0, 0, 1, 1], [], []>} : vector<8x128xf32>, vector<128x128xf32>, vector<8x128xf32> -> vector<8x128xf32>
    %7 = arith.addf %3, %6 : vector<8x128xf32>
    %c0_6 = arith.constant 0 : index
    %c0_7 = arith.constant 0 : index
    %8 = vector.load %arg7[%c0_6, %c0_7] : memref<8x128xf32, #tpu.memory_space<vmem>>, vector<8x128xf32>
    tpu.vector_store %arg7[%c0_6, %c0_7], %7 {strides = array<i32>} : memref<8x128xf32, #tpu.memory_space<vmem>>, vector<8x128xf32>,
    %c0_i32_8 = arith.constant 0 : i32
    %9 = arith.cmpi eq, %arg2, %c0_i32_8 : i32
    %10 = arith.extui %9 : i1 to i32
    %c0_i32_9 = arith.constant 0 : i32
    %11 = arith.cmpi ne, %10, %c0_i32_9 : i32
    scf.if %11 {
      %c0_10 = arith.constant 0 : index
      %c0_11 = arith.constant 0 : index
      %12 = vector.load %arg7[%c0_10, %c0_11] : memref<8x128xf32, #tpu.memory_space<vmem>>, vector<8x128xf32>
      %c0_12 = arith.constant 0 : index
      %c0_13 = arith.constant 0 : index
      %13 = vector.load %arg5[%c0_12, %c0_13] : memref<1x128xf32, #tpu.memory_space<vmem>>, vector<1x128xf32>
      %14 = vector.broadcast %13 : vector<1x128xf32> to vector<8x128xf32>
      %15 = arith.addf %12, %14 : vector<8x128xf32>
      %c0_14 = arith.constant 0 : index
      %c0_15 = arith.constant 0 : index
      %16 = vector.load %arg6[%c0_14, %c0_15] : memref<8x128xf32, #tpu.memory_space<vmem>>, vector<8x128xf32>
      tpu.vector_store %arg6[%c0_14, %c0_15], %15 {strides = array<i32>} : memref<8x128xf32, #tpu.memory_space<vmem>>, vector<8x128xf32>,
    } else {
    }
    return
  }
  func.func @transform_0(%arg0: i32, %arg1: i32, %arg2: i32) -> (i32, i32) {
    %c0_i32 = arith.constant 0 : i32
    return %arg0, %arg2 : i32, i32
  }
  func.func @transform_1(%arg0: i32, %arg1: i32, %arg2: i32) -> (i32, i32) {
    %c0_i32 = arith.constant 0 : i32
    return %arg2, %arg1 : i32, i32
  }
  func.func @transform_2(%arg0: i32, %arg1: i32, %arg2: i32) -> (i32, i32) {
    %c0_i32 = arith.constant 0 : i32
    %c0_i32_0 = arith.constant 0 : i32
    return %c0_i32, %arg1 : i32, i32
  }
  func.func @transform_3(%arg0: i32, %arg1: i32, %arg2: i32) -> (i32, i32) {
    %c0_i32 = arith.constant 0 : i32
    return %arg0, %arg1 : i32, i32
  }
}

</mosaic_0001>

<llo_original>
// kernel: dense_model_for_inference_forward.1
$region0: #{dense_model_for_inference_forward.1}
  #allocation0 [shape = 'u32[]', space=smem, size = 0x4, offset = 0x4, fixed_abs, tag = 'smem constant byte address 0x4 - core index']
  #allocation1 [shape = 'u32[72,128]{1,0:T(1,128)}', space=vmem, size = 0x9000, scoped, tag = 'internal scratch']
  #allocation2 [shape = 'f32[8,128]{1,0:T(8,128)}', space=vmem, size = 0x1000, scoped, tag = 'scratch operand']
  %s0 = inlined_call_operand.vmem [shape: f32[8,128], index: 0, kind: input, shape index: {}]
  %s1 = inlined_call_operand.vmem [shape: f32[128,128], index: 1, kind: input, shape index: {}]
  %s2 = inlined_call_operand.vmem [shape: f32[1,128], index: 2, kind: input, shape index: {}]
  %s3 = inlined_call_operand.vmem [shape: f32[8,128], index: 3, kind: output, shape index: {}]
  %s4 = sld [smem:[#allocation0]]
  $region30: #{dense_model_for_inference_forward.1} parent=0
    _
  %s6 = ssub.s32 1, %s4
  %s7 = scalar_select 0, %s6, %s4
  // Predicated region
  $region2: #{dense_model_for_inference_forward.1} parent=0 // pred_check
    _
  $region3: #{dense_model_for_inference_forward.1} parent=0 // pred_check_branch
    %9 = sbr.rel (0) target = $region5
  $region4: #{dense_model_for_inference_forward.1} parent=0 // pred_region
    _
  $region5: #{dense_model_for_inference_forward.1} parent=0 // pred_fallthru
    _
  // Predicated region
  $region6: #{dense_model_for_inference_forward.1} parent=0 // pred_check
    _
  $region7: #{dense_model_for_inference_forward.1} parent=0 // pred_check_branch
    %11 = sbr.rel (0) target = $region9
  $region8: #{dense_model_for_inference_forward.1} parent=0 // pred_region
    _
  $region9: #{dense_model_for_inference_forward.1} parent=0 // pred_fallthru
    _
  // Predicated region
  $region10: #{dense_model_for_inference_forward.1} parent=0 // pred_check
    _
  $region11: #{dense_model_for_inference_forward.1} parent=0 // pred_check_branch
    %13 = sbr.rel (0) target = $region13
  $region12: #{dense_model_for_inference_forward.1} parent=0 // pred_region
    _
  $region13: #{dense_model_for_inference_forward.1} parent=0 // pred_fallthru
    _
  %p14 = scmp.eq.s32.totalorder 0, 0
  // Predicated region
  $region14: #{dense_model_for_inference_forward.1} parent=0 // pred_check
    %p15 = pneg %p14
  $region15: #{dense_model_for_inference_forward.1} parent=0 // pred_check_branch
    %17 = sbr.rel (%p15) target = $region17
  $region16: #{dense_model_for_inference_forward.1} parent=0 // pred_region
    %18 = vst [vmem:[#allocation2] sm:$0xff] 0.0
  $region17: #{dense_model_for_inference_forward.1} parent=0 // pred_fallthru
    _
  %v19 = vld [vmem:[#allocation2] sm:$0xff]
  %v20 = vld [vmem:[%s0] sm:$0xff]
  %v21 = vld [vmem:[%s1] sm:$0xff]
  %v22 = vld [vmem:[%s1 + $0x8] sm:$0xff]
  %v23 = vld [vmem:[%s1 + $0x10] sm:$0xff]
  %v24 = vld [vmem:[%s1 + $0x18] sm:$0xff]
  %v25 = vld [vmem:[%s1 + $0x20] sm:$0xff]
  %v26 = vld [vmem:[%s1 + $0x28] sm:$0xff]
  %v27 = vld [vmem:[%s1 + $0x30] sm:$0xff]
  %v28 = vld [vmem:[%s1 + $0x38] sm:$0xff]
  %v29 = vld [vmem:[%s1 + $0x40] sm:$0xff]
  %v30 = vld [vmem:[%s1 + $0x48] sm:$0xff]
  %v31 = vld [vmem:[%s1 + $0x50] sm:$0xff]
  %v32 = vld [vmem:[%s1 + $0x58] sm:$0xff]
  %v33 = vld [vmem:[%s1 + $0x60] sm:$0xff]
  %v34 = vld [vmem:[%s1 + $0x68] sm:$0xff]
  %v35 = vld [vmem:[%s1 + $0x70] sm:$0xff]
  %v36 = vld [vmem:[%s1 + $0x78] sm:$0xff]
  %37 = vmatpush.msra.mxu0 %v36
  %38 = vmatpush.msra.mxu0 %v35
  %39 = vmatpush.msra.mxu0 %v34
  %40 = vmatpush.msra.mxu0 %v33
  %41 = vmatpush.msra.mxu0 %v32
  %42 = vmatpush.msra.mxu0 %v31
  %43 = vmatpush.msra.mxu0 %v30
  %44 = vmatpush.msra.mxu0 %v29
  %45 = vmatpush.msra.mxu0 %v28
  %46 = vmatpush.msra.mxu0 %v27
  %47 = vmatpush.msra.mxu0 %v26
  %48 = vmatpush.msra.mxu0 %v25
  %49 = vmatpush.msra.mxu0 %v24
  %50 = vmatpush.msra.mxu0 %v23
  %51 = vmatpush.msra.mxu0 %v22
  %52 = vmatpush.msra.mxu0 %v21
  %53 = vmatmul.f32.gmra.mxu0 %v20
  %v54 = vpop.f32.mrf.mxu0
  %v55 = vadd.f32 0.0, %v54
  %56 = vdwg.mxu0
  %v57 = vadd.f32 %v19, %v55
  %58 = vst [vmem:[#allocation2] sm:$0xff] %v57
  // Predicated region
  $region18: #{dense_model_for_inference_forward.1} parent=0 // pred_check
    %p59 = pneg %p14
  $region19: #{dense_model_for_inference_forward.1} parent=0 // pred_check_branch
    %61 = sbr.rel (%p59) target = $region21
  $region20: #{dense_model_for_inference_forward.1} parent=0 // pred_region
    %v62 = vld [vmem:[#allocation2] sm:$0xff]
    %v63 = vld [vmem:[%s2] sm:$0x1]
    %v65 = vperm.slane %v63, 0
    %v67 = vadd.f32 %v62, %v65
    %68 = vst [vmem:[%s3] sm:$0xff] %v67
  $region21: #{dense_model_for_inference_forward.1} parent=0 // pred_fallthru
    _
  // Predicated region
  $region22: #{dense_model_for_inference_forward.1} parent=0 // pred_check
    _
  $region23: #{dense_model_for_inference_forward.1} parent=0 // pred_check_branch
    %70 = sbr.rel (0) target = $region25
  $region24: #{dense_model_for_inference_forward.1} parent=0 // pred_region
    _
  $region25: #{dense_model_for_inference_forward.1} parent=0 // pred_fallthru
    _
  // Predicated region
  $region26: #{dense_model_for_inference_forward.1} parent=0 // pred_check
    _
  $region27: #{dense_model_for_inference_forward.1} parent=0 // pred_check_branch
    %72 = sbr.rel (0) target = $region29
  $region28: #{dense_model_for_inference_forward.1} parent=0 // pred_region
    _
  $region29: #{dense_model_for_inference_forward.1} parent=0 // pred_fallthru
    _

</llo_original>
